<compile_context>
chip_gen: v6e
topology: v6e:2x2x1
jax: 0.10.0
libtpu: 0.0.40
codegen_flags: <defaults>
</compile_context>

<pallas_src>
import jax
import jax.numpy as jnp
from jax.experimental import pallas as pl
from jax.experimental.pallas import tpu as pltpu

_LANE = 128  # TPU vreg lane width


def _linreg_kernel(w_ref, b_ref, x_ref, o_ref):
    # w_ref, b_ref: (1,) f32 scalars in SMEM.
    # x_ref, o_ref: (tile_rows, 128) lane-dense tiles in VMEM.
    w = w_ref[0]
    b = b_ref[0]
    y = x_ref[...].astype(jnp.float32) * w + b
    o_ref[...] = y.astype(o_ref.dtype)


def linear_regression_forward(x, weight, bias, *, target_tile_bytes=2 * 1024 * 1024):
    """y = x @ weight.T + bias, with weight (1,1), bias (1,), x (N,1)."""
    n, f = x.shape
    assert f == 1 and weight.shape == (1, 1) and bias.shape == (1,)
    out_dtype = x.dtype

    w_scalar = weight.reshape((1,)).astype(jnp.float32)
    b_scalar = bias.reshape((1,)).astype(jnp.float32)

    itemsize = x.dtype.itemsize
    sublane = max(8, 32 // itemsize)          # 8 (f32) / 16 (bf16) / 32 (int8)

    rows = pl.cdiv(n, _LANE)
    flat = x.reshape(-1)                      # (N,1) -> (N,): free bitcast
    needs_pad = (n % _LANE) != 0
    if needs_pad:
        # <128 extra elements; allow_input_fusion below lets XLA fuse this pad
        # into the pallas_call operand instead of materializing a full copy.
        # TODO(synk): a fully pad-free ragged-N path would need a manual-DMA
        # (pl.ANY) kernel with a bounded tail copy.
        flat = jnp.pad(flat, (0, rows * _LANE - n))
    x2d = flat.reshape(rows, _LANE)           # free bitcast when no pad

    # Tile selection: ~target_tile_bytes per buffer, rounded to the dtype's
    # sublane packing; split mid-size inputs so both v7x TCs get work.
    max_tile_rows = max(
        sublane,
        (target_tile_bytes // (_LANE * itemsize)) // sublane * sublane,
    )
    if rows > max_tile_rows:
        tile_rows = max_tile_rows
    elif rows >= 2 * sublane:
        # Split into ~2 tiles (sublane-aligned) so the "parallel" axis feeds
        # both TensorCores on v7x; tiles stay >= 0.5 MiB at these sizes only
        # when the array is big enough to matter anyway.
        tile_rows = ((pl.cdiv(rows, 2) + sublane - 1) // sublane) * sublane
    else:
        tile_rows = rows                      # single full-extent block
    num_tiles = pl.cdiv(rows, tile_rows)      # boundary block masked if ragged

    out2d = pl.pallas_call(
        _linreg_kernel,
        out_shape=jax.ShapeDtypeStruct((rows, _LANE), out_dtype),
        grid=(num_tiles,),
        in_specs=[
            pl.BlockSpec(memory_space=pltpu.SMEM),               # weight scalar
            pl.BlockSpec(memory_space=pltpu.SMEM),               # bias scalar
            pl.BlockSpec((tile_rows, _LANE), lambda i: (i, 0)),   # x row tile
        ],
        out_specs=pl.BlockSpec((tile_rows, _LANE), lambda i: (i, 0)),
        compiler_params=pltpu.CompilerParams(
            dimension_semantics=("parallel",),                    # 2 TCs on v7x
            allow_input_fusion=[False, False, True],              # fuse the pad
        ),
    )(w_scalar, b_scalar, x2d)

    if needs_pad:
        return out2d.reshape(-1)[:n].reshape(n, 1)
    return out2d.reshape(n, 1)                # free bitcast


if __name__ == "__main__":
    key = jax.random.PRNGKey(0)
    kx1, kx2, kx3, kx4, kw, kb = jax.random.split(key, 6)

    # Deterministic parameters consistent with nn.Linear(1, 1).
    weight = jax.random.uniform(kw, (1, 1), minval=-1.0, maxval=1.0,
                                dtype=jnp.float32)
    bias = jax.random.uniform(kb, (1,), minval=-1.0, maxval=1.0,
                              dtype=jnp.float32)

    def ref(x):
        return (x.astype(jnp.float32) @ weight.T + bias).astype(x.dtype)

    # 1) Small case (like the PyTorch lesson's tiny batch): pad path, 1 tile.
    x1 = jax.random.normal(kx1, (8, 1), dtype=jnp.float32)
    y1 = jax.block_until_ready(linear_regression_forward(x1, weight, bias))
    assert y1.shape == (8, 1)
    assert jnp.allclose(y1, ref(x1), atol=1e-6), "mismatch (small)"

    # 2) N % 128 == 0: no pad, no output slice, 2-tile parallel grid.
    x2 = jax.random.normal(kx2, (12288, 1), dtype=jnp.float32)
    y2 = jax.block_until_ready(linear_regression_forward(x2, weight, bias))
    assert y2.shape == (12288, 1)
    assert jnp.allclose(y2, ref(x2), atol=1e-5), "mismatch (lane-aligned)"

    # 3) Ragged N: fused pad + masked boundary block in the grid.
    n3 = 131072 + 777
    x3 = jax.random.normal(kx3, (n3, 1), dtype=jnp.float32)
    y3 = jax.block_until_ready(linear_regression_forward(x3, weight, bias))
    assert y3.shape == (n3, 1)
    assert jnp.allclose(y3, ref(x3), atol=1e-5), "mismatch (ragged)"

    # 4) bf16 input: dtype-scaled (16-sublane) tiling, bf16 HBM traffic.
    x4 = jax.random.normal(kx4, (4096, 1), dtype=jnp.bfloat16)
    y4 = jax.block_until_ready(linear_regression_forward(x4, weight, bias))
    assert y4.shape == (4096, 1)
    assert jnp.allclose(y4.astype(jnp.float32), ref(x4).astype(jnp.float32),
                        atol=1e-2), "mismatch (bf16)"

    print("KERNEL_OK")
</pallas_src>

<mosaic_0001>
module attributes {stable_mosaic.version = 11 : i64} {
  func.func @_linreg_kernel(%arg0: i32, %arg1: memref<1xf32, #tpu.memory_space<smem>>, %arg2: memref<1xf32, #tpu.memory_space<smem>>, %arg3: memref<1x128xf32, #tpu.memory_space<vmem>>, %arg4: memref<1x128xf32, #tpu.memory_space<vmem>>) attributes {dimension_semantics = [#tpu.dimension_semantics<parallel>], iteration_bounds = array<i64: 1>, scalar_prefetch = 0 : i64, scratch_operands = 0 : i64, tpu.core_type = #tpu.core_type<tc>, window_params = [{transform_indices = @transform_0, window_bounds = array<i64: 1>}, {transform_indices = @transform_1, window_bounds = array<i64: 1>}, {transform_indices = @transform_2, window_bounds = array<i64: 1, 128>}, {transform_indices = @transform_3, window_bounds = array<i64: 1, 128>}]} {
    %c0 = arith.constant 0 : index
    %0 = memref.load %arg1[%c0] : memref<1xf32, #tpu.memory_space<smem>>
    %c0_0 = arith.constant 0 : index
    %1 = memref.load %arg2[%c0_0] : memref<1xf32, #tpu.memory_space<smem>>
    %c0_1 = arith.constant 0 : index
    %c0_2 = arith.constant 0 : index
    %2 = vector.load %arg3[%c0_1, %c0_2] : memref<1x128xf32, #tpu.memory_space<vmem>>, vector<1x128xf32>
    %3 = vector.broadcast %0 : f32 to vector<1x128xf32>
    %4 = arith.mulf %2, %3 : vector<1x128xf32>
    %5 = vector.broadcast %1 : f32 to vector<1x128xf32>
    %6 = arith.addf %4, %5 : vector<1x128xf32>
    %c0_3 = arith.constant 0 : index
    %c0_4 = arith.constant 0 : index
    %7 = vector.load %arg4[%c0_3, %c0_4] : memref<1x128xf32, #tpu.memory_space<vmem>>, vector<1x128xf32>
    tpu.vector_store %arg4[%c0_3, %c0_4], %6 {strides = array<i32>} : memref<1x128xf32, #tpu.memory_space<vmem>>, vector<1x128xf32>,
    return
  }
  func.func @transform_0(%arg0: i32) -> i32 {
    %c0_i32 = arith.constant 0 : i32
    %c0_i32_0 = arith.constant 0 : i32
    return %c0_i32 : i32
  }
  func.func @transform_1(%arg0: i32) -> i32 {
    %c0_i32 = arith.constant 0 : i32
    %c0_i32_0 = arith.constant 0 : i32
    return %c0_i32 : i32
  }
  func.func @transform_2(%arg0: i32) -> (i32, i32) {
    %c0_i32 = arith.constant 0 : i32
    %c0_i32_0 = arith.constant 0 : i32
    return %arg0, %c0_i32 : i32, i32
  }
  func.func @transform_3(%arg0: i32) -> (i32, i32) {
    %c0_i32 = arith.constant 0 : i32
    %c0_i32_0 = arith.constant 0 : i32
    return %arg0, %c0_i32 : i32, i32
  }
}

</mosaic_0001>

<llo_original>
// kernel: tpu_custom_call.1
$region0: #{tpu_custom_call.1}
  #allocation0 [shape = 'u32[]', space=smem, size = 0x4, offset = 0x4, fixed_abs, tag = 'smem constant byte address 0x4 - core index']
  #allocation1 [shape = 'u32[144,128]{1,0:T(1,128)}', space=vmem, size = 0x12000, scoped, tag = 'internal scratch']
  #allocation2 [shape = 'f32[1]{0:T(128)S(6)}', space=smem, size = 0x200, scoped, tag = 'scoped memory for tpu_custom_call.1']
  #allocation3 [shape = 'f32[1]{0:T(128)S(6)}', space=smem, size = 0x200, scoped, tag = 'scoped memory for tpu_custom_call.1']
  %s0 = inlined_call_operand.<no memory space> [shape: f32[1], index: 0, kind: input, shape index: {}]
  %s1 = inlined_call_operand.<no memory space> [shape: f32[1], index: 1, kind: input, shape index: {}]
  %s2 = inlined_call_operand.vmem [shape: f32[1,128], index: 2, kind: input, shape index: {}]
  %s3 = inlined_call_operand.hbm [shape: f32[1,128], index: 3, kind: output, shape index: {}]
  %s4 = sld [smem:[#allocation0]]
  $region22: #{tpu_custom_call.1} parent=0
    _
  %s6 = ssub.s32 1, %s4
  %s7 = scalar_select 0, %s6, %s4
  %8 = sst [smem:[#allocation2]] %s0
  %9 = sst [smem:[#allocation3]] %s1
  $region1: #{tpu_custom_call.1} parent=0
    #allocation4 [shape = 'u8[512]{0}', space=vmem, size = 0x400, scoped, tag = 'output window, operand 0, single buffered']
    #allocation5 [shape = 's32[1]{0}', space=sflag, size = 0x4, scoped, tag = 'scoped memory for tpu_custom_call.1']
    %10 = vsyncpa [#allocation5], 0
    // Predicated region
    $region2: #{tpu_custom_call.1} parent=1 // pred_check
      _
    $region3: #{tpu_custom_call.1} parent=1 // pred_check_branch
      %12 = sbr.rel (0) target = $region5
    $region4: #{tpu_custom_call.1} parent=1 // pred_region
      _
    $region5: #{tpu_custom_call.1} parent=1 // pred_fallthru
      _
    // Predicated region
    $region6: #{tpu_custom_call.1} parent=1 // pred_check
      _
    $region7: #{tpu_custom_call.1} parent=1 // pred_check_branch
      %14 = sbr.rel (0) target = $region9
    $region8: #{tpu_custom_call.1} parent=1 // pred_region
      _
    $region9: #{tpu_custom_call.1} parent=1 // pred_fallthru
      _
    // Predicated region
    $region10: #{tpu_custom_call.1} parent=1 // pred_check
      _
    $region11: #{tpu_custom_call.1} parent=1 // pred_check_branch
      %16 = sbr.rel (0) target = $region13
    $region12: #{tpu_custom_call.1} parent=1 // pred_region
      _
    $region13: #{tpu_custom_call.1} parent=1 // pred_fallthru
      _
    %s17 = sld [smem:[#allocation2]]
    %s18 = sld [smem:[#allocation3]]
    %v19 = vld [vmem:[%s2] sm:$0x1]
    %v20 = vstv %s17
    %v21 = vmul.f32 %v19, %v20
    %v22 = vstv %s18
    %v23 = vadd.f32 %v21, %v22
    %24 = vst [vmem:[#allocation4] sm:$0x1] %v23
    // Predicated region
    $region14: #{tpu_custom_call.1} parent=1 // pred_check
      _
    $region15: #{tpu_custom_call.1} parent=1 // pred_check_branch
      %26 = sbr.rel (0) target = $region17
    $region16: #{tpu_custom_call.1} parent=1 // pred_region
      %s28 = ssub.s32 16, 16
      %29 = vsyncadd [#allocation5], %s28
      %s31 = sshll.u32 [#allocation4], 4
      %s32 = int_to_ptr.vmem [resolvable:$true] %s31
      %34 = dma.vmem_to_hbm [thread:$0]  %s32, 16, %s3, [#allocation5]
    $region17: #{tpu_custom_call.1} parent=1 // pred_fallthru
      _
    // Predicated region
    $region18: #{tpu_custom_call.1} parent=1 // pred_check
      _
    $region19: #{tpu_custom_call.1} parent=1 // pred_check_branch
      %36 = sbr.rel (0) target = $region21
    $region20: #{tpu_custom_call.1} parent=1 // pred_region
      %37 = dma.done [#allocation5], 16
    $region21: #{tpu_custom_call.1} parent=1 // pred_fallthru
      _
    %38 = vsyncpa [#allocation5], 1

</llo_original>
